<compile_context>
chip_gen: v5e
topology: v5e:2x2
jax: 0.10.0
libtpu: 0.0.40
codegen_flags: <defaults>
</compile_context>

<pallas_src>
import math

import jax
import jax.numpy as jnp
import numpy as np
from jax.experimental import pallas as pl
from jax.experimental.pallas import tpu as pltpu

HIDDEN = 64
IN_DIM = 1
OUT_DIM = 1


# ----------------------------- Pallas kernel ------------------------------ #
def _gnn_kernel(a_ref, x_ref, w1_ref, b1_ref, w2_ref, b2_ref,
                p_ref, wl_ref, bl_ref, o_ref):
    a = a_ref[...]                                     # [N, N] bf16, read once

    # GCN layer 1: X @ W1 is rank-1 (IN_DIM == 1) -> VPU broadcast multiply.
    xw1 = (x_ref[...] * w1_ref[...]).astype(jnp.bfloat16)          # [N, H]
    h1 = jnp.maximum(
        jnp.dot(a, xw1, preferred_element_type=jnp.float32) + b1_ref[...],
        0.0)                                                        # f32

    # GCN layer 2: relu(A_hat @ (h1 @ W2) + b2)
    hw2 = jnp.dot(h1.astype(jnp.bfloat16), w2_ref[...],
                  preferred_element_type=jnp.float32)
    h2 = jnp.maximum(
        jnp.dot(a, hw2.astype(jnp.bfloat16),
                preferred_element_type=jnp.float32) + b2_ref[...],
        0.0)                                                        # f32

    # global_mean_pool: P is the row-normalized one-hot [num_graphs, num_nodes]
    pooled = jnp.dot(p_ref[...], h2.astype(jnp.bfloat16),
                     preferred_element_type=jnp.float32)

    # final Linear
    o_ref[...] = (jnp.dot(pooled.astype(jnp.bfloat16), wl_ref[...],
                          preferred_element_type=jnp.float32) + bl_ref[...])


# ------------------------------ wrapper ------------------------------------ #
def _round_up(v, m):
    return ((v + m - 1) // m) * m


def _pad2(a, rows, cols):
    return jnp.pad(a, ((0, rows - a.shape[0]), (0, cols - a.shape[1])))


def gnn_forward_pallas(x, a_hat, pool_mat, params):
    """x: [N, IN_DIM], a_hat: [N, N], pool_mat: [G, N]."""
    n, in_dim = x.shape
    assert in_dim == IN_DIM == 1, "rank-1 X@W1 path assumes input_dim == 1"
    g = pool_mat.shape[0]

    n_pad = max(_round_up(n, 128), 128)
    g_pad = max(_round_up(g, 8), 8)
    h_pad = _round_up(HIDDEN, 128)
    o_pad = _round_up(OUT_DIM, 128)

    # bf16 MXU operands (cast BEFORE zero padding); biases / epilogue stay f32.
    a_p = _pad2(a_hat.astype(jnp.bfloat16), n_pad, n_pad)
    x_p = _pad2(x.astype(jnp.float32), n_pad, 1)
    w1_p = _pad2(params["w1"].astype(jnp.float32), 1, h_pad)     # [1, H] row
    b1_p = _pad2(params["b1"][None, :].astype(jnp.float32), 1, h_pad)
    w2_p = _pad2(params["w2"].astype(jnp.bfloat16), h_pad, h_pad)
    b2_p = _pad2(params["b2"][None, :].astype(jnp.float32), 1, h_pad)
    p_p = _pad2(pool_mat.astype(jnp.bfloat16), g_pad, n_pad)
    wl_p = _pad2(params["wl"].astype(jnp.bfloat16), h_pad, o_pad)
    bl_p = _pad2(params["bl"][None, :].astype(jnp.float32), 1, o_pad)

    full = lambda shape: pl.BlockSpec(shape, lambda i: (0,) * len(shape))

    out = pl.pallas_call(
        _gnn_kernel,
        out_shape=jax.ShapeDtypeStruct((g_pad, o_pad), jnp.float32),
        grid=(1,),
        in_specs=[
            full((n_pad, n_pad)),   # A_hat (bf16)
            full((n_pad, 1)),       # x column (f32)
            full((1, h_pad)),       # W1 row (f32)
            full((1, h_pad)),       # b1
            full((h_pad, h_pad)),   # W2 (bf16)
            full((1, h_pad)),       # b2
            full((g_pad, n_pad)),   # pooling matrix (bf16)
            full((h_pad, o_pad)),   # Wl (bf16)
            full((1, o_pad)),       # bl
        ],
        out_specs=full((g_pad, o_pad)),
        compiler_params=pltpu.CompilerParams(
            dimension_semantics=("arbitrary",)),
    )(a_p, x_p, w1_p, b1_p, w2_p, b2_p, p_p, wl_p, bl_p)

    return out[:g, :OUT_DIM]


# ------------------------------ JAX glue ---------------------------------- #
def gcn_norm_adj(edge_index, num_nodes):
    """Dense D^{-1/2} (A + I) D^{-1/2} as used by torch_geometric GCNConv."""
    src, dst = edge_index[0], edge_index[1]
    w = jnp.ones(src.shape[0], jnp.float32)
    adj = jnp.zeros((num_nodes, num_nodes), jnp.float32).at[dst, src].add(w)
    adj = adj + jnp.eye(num_nodes, dtype=jnp.float32)
    deg = adj.sum(axis=1)
    dinv = jnp.where(deg > 0, jax.lax.rsqrt(deg), 0.0)
    return dinv[:, None] * adj * dinv[None, :]


def mean_pool_matrix(batch, num_graphs):
    onehot = (batch[None, :] == jnp.arange(num_graphs)[:, None]).astype(jnp.float32)
    counts = onehot.sum(axis=1, keepdims=True)
    return onehot / jnp.maximum(counts, 1.0)


def init_params(key):
    k1, k2, k3, k4 = jax.random.split(key, 4)

    def glorot(k, shape):
        limit = math.sqrt(6.0 / (shape[0] + shape[1]))
        return jax.random.uniform(k, shape, jnp.float32, -limit, limit)

    bound = 1.0 / math.sqrt(HIDDEN)
    return {
        "w1": glorot(k1, (IN_DIM, HIDDEN)),
        "b1": jnp.zeros((HIDDEN,), jnp.float32),
        "w2": glorot(k2, (HIDDEN, HIDDEN)),
        "b2": jnp.zeros((HIDDEN,), jnp.float32),
        "wl": jax.random.uniform(k3, (HIDDEN, OUT_DIM), jnp.float32, -bound, bound),
        "bl": jax.random.uniform(k4, (OUT_DIM,), jnp.float32, -bound, bound),
    }


def gnn_forward_ref(x, a_hat, pool_mat, params):
    h1 = jnp.maximum(a_hat @ (x @ params["w1"]) + params["b1"], 0.0)
    h2 = jnp.maximum(a_hat @ (h1 @ params["w2"]) + params["b2"], 0.0)
    return pool_mat @ h2 @ params["wl"] + params["bl"]


# -------------------------------- main ------------------------------------ #
if __name__ == "__main__":
    key = jax.random.PRNGKey(0)
    kx, kp = jax.random.split(key)

    # Pack 16 graphs of 8 nodes each (undirected rings) -> 128 real nodes,
    # exactly filling the 128-row tile (no wasted padding rows).
    nodes_per_graph = 8
    num_graphs = 16
    num_nodes = nodes_per_graph * num_graphs

    def ring_edges(n, offset):
        s = jnp.arange(n) + offset
        d = (jnp.arange(n) + 1) % n + offset
        return jnp.stack([jnp.concatenate([s, d]), jnp.concatenate([d, s])])

    edge_index = jnp.concatenate(
        [ring_edges(nodes_per_graph, gidx * nodes_per_graph)
         for gidx in range(num_graphs)], axis=1)
    batch = jnp.repeat(jnp.arange(num_graphs, dtype=jnp.int32), nodes_per_graph)
    x = jax.random.normal(kx, (num_nodes, IN_DIM), jnp.float32)

    params = init_params(kp)

    a_hat = gcn_norm_adj(edge_index, num_nodes)
    pool_mat = mean_pool_matrix(batch, num_graphs)

    out = gnn_forward_pallas(x, a_hat, pool_mat, params)
    out = jax.block_until_ready(out)

    ref = gnn_forward_ref(x, a_hat, pool_mat, params)
    # bf16 MXU inputs (f32 accumulation) -> ~1e-2 relative tolerance.
    np.testing.assert_allclose(np.asarray(out), np.asarray(ref), rtol=2e-2, atol=2e-2)

    print("KERNEL_OK")
</pallas_src>

<mosaic_0001>
module attributes {stable_mosaic.version = 11 : i64} {
  func.func @_gnn_kernel(%arg0: i32, %arg1: memref<128x128xbf16, #tpu.memory_space<vmem>>, %arg2: memref<128x1xf32, #tpu.memory_space<vmem>>, %arg3: memref<1x128xf32, #tpu.memory_space<vmem>>, %arg4: memref<1x128xf32, #tpu.memory_space<vmem>>, %arg5: memref<128x128xbf16, #tpu.memory_space<vmem>>, %arg6: memref<1x128xf32, #tpu.memory_space<vmem>>, %arg7: memref<16x128xbf16, #tpu.memory_space<vmem>>, %arg8: memref<128x128xbf16, #tpu.memory_space<vmem>>, %arg9: memref<1x128xf32, #tpu.memory_space<vmem>>, %arg10: memref<16x128xf32, #tpu.memory_space<vmem>>) attributes {dimension_semantics = [#tpu.dimension_semantics<arbitrary>], iteration_bounds = array<i64: 1>, scalar_prefetch = 0 : i64, scratch_operands = 0 : i64, tpu.core_type = #tpu.core_type<tc>, window_params = [{pipeline_mode = #tpu.pipeline_mode<synchronous>, transform_indices = @transform_0, window_bounds = array<i64: 128, 128>}, {pipeline_mode = #tpu.pipeline_mode<synchronous>, transform_indices = @transform_1, window_bounds = array<i64: 128, 1>}, {pipeline_mode = #tpu.pipeline_mode<synchronous>, transform_indices = @transform_2, window_bounds = array<i64: 1, 128>}, {pipeline_mode = #tpu.pipeline_mode<synchronous>, transform_indices = @transform_3, window_bounds = array<i64: 1, 128>}, {pipeline_mode = #tpu.pipeline_mode<synchronous>, transform_indices = @transform_4, window_bounds = array<i64: 128, 128>}, {pipeline_mode = #tpu.pipeline_mode<synchronous>, transform_indices = @transform_5, window_bounds = array<i64: 1, 128>}, {pipeline_mode = #tpu.pipeline_mode<synchronous>, transform_indices = @transform_6, window_bounds = array<i64: 16, 128>}, {pipeline_mode = #tpu.pipeline_mode<synchronous>, transform_indices = @transform_7, window_bounds = array<i64: 128, 128>}, {pipeline_mode = #tpu.pipeline_mode<synchronous>, transform_indices = @transform_8, window_bounds = array<i64: 1, 128>}, {pipeline_mode = #tpu.pipeline_mode<synchronous>, transform_indices = @transform_9, window_bounds = array<i64: 16, 128>}]} {
    %c0 = arith.constant 0 : index
    %c0_0 = arith.constant 0 : index
    %0 = vector.load %arg1[%c0, %c0_0] : memref<128x128xbf16, #tpu.memory_space<vmem>>, vector<128x128xbf16>
    %c0_1 = arith.constant 0 : index
    %c0_2 = arith.constant 0 : index
    %1 = vector.load %arg2[%c0_1, %c0_2] : memref<128x1xf32, #tpu.memory_space<vmem>>, vector<128x1xf32>
    %c0_3 = arith.constant 0 : index
    %c0_4 = arith.constant 0 : index
    %2 = vector.load %arg3[%c0_3, %c0_4] : memref<1x128xf32, #tpu.memory_space<vmem>>, vector<1x128xf32>
    %3 = vector.broadcast %1 : vector<128x1xf32> to vector<128x128xf32>
    %4 = vector.broadcast %2 : vector<1x128xf32> to vector<128x128xf32>
    %5 = arith.mulf %3, %4 : vector<128x128xf32>
    %6 = arith.truncf %5 : vector<128x128xf32> to vector<128x128xbf16>
    %cst = arith.constant dense<0.000000e+00> : vector<128x128xf32>
    %7 = tpu.matmul %0, %6, %cst {dimension_numbers = #tpu.dot_dimension_numbers<[1], [0], [0], [1], [0, 0, 1, 1], [], []>} : vector<128x128xbf16>, vector<128x128xbf16>, vector<128x128xf32> -> vector<128x128xf32>
    %c0_5 = arith.constant 0 : index
    %c0_6 = arith.constant 0 : index
    %8 = vector.load %arg4[%c0_5, %c0_6] : memref<1x128xf32, #tpu.memory_space<vmem>>, vector<1x128xf32>
    %9 = vector.broadcast %8 : vector<1x128xf32> to vector<128x128xf32>
    %10 = arith.addf %7, %9 : vector<128x128xf32>
    %cst_7 = arith.constant 0.000000e+00 : f32
    %11 = vector.broadcast %cst_7 : f32 to vector<128x128xf32>
    %12 = arith.maximumf %10, %11 : vector<128x128xf32>
    %13 = arith.truncf %12 : vector<128x128xf32> to vector<128x128xbf16>
    %c0_8 = arith.constant 0 : index
    %c0_9 = arith.constant 0 : index
    %14 = vector.load %arg5[%c0_8, %c0_9] : memref<128x128xbf16, #tpu.memory_space<vmem>>, vector<128x128xbf16>
    %cst_10 = arith.constant dense<0.000000e+00> : vector<128x128xf32>
    %15 = tpu.matmul %13, %14, %cst_10 {dimension_numbers = #tpu.dot_dimension_numbers<[1], [0], [0], [1], [0, 0, 1, 1], [], []>} : vector<128x128xbf16>, vector<128x128xbf16>, vector<128x128xf32> -> vector<128x128xf32>
    %16 = arith.truncf %15 : vector<128x128xf32> to vector<128x128xbf16>
    %cst_11 = arith.constant dense<0.000000e+00> : vector<128x128xf32>
    %17 = tpu.matmul %0, %16, %cst_11 {dimension_numbers = #tpu.dot_dimension_numbers<[1], [0], [0], [1], [0, 0, 1, 1], [], []>} : vector<128x128xbf16>, vector<128x128xbf16>, vector<128x128xf32> -> vector<128x128xf32>
    %c0_12 = arith.constant 0 : index
    %c0_13 = arith.constant 0 : index
    %18 = vector.load %arg6[%c0_12, %c0_13] : memref<1x128xf32, #tpu.memory_space<vmem>>, vector<1x128xf32>
    %19 = vector.broadcast %18 : vector<1x128xf32> to vector<128x128xf32>
    %20 = arith.addf %17, %19 : vector<128x128xf32>
    %cst_14 = arith.constant 0.000000e+00 : f32
    %21 = vector.broadcast %cst_14 : f32 to vector<128x128xf32>
    %22 = arith.maximumf %20, %21 : vector<128x128xf32>
    %c0_15 = arith.constant 0 : index
    %c0_16 = arith.constant 0 : index
    %23 = vector.load %arg7[%c0_15, %c0_16] : memref<16x128xbf16, #tpu.memory_space<vmem>>, vector<16x128xbf16>
    %24 = arith.truncf %22 : vector<128x128xf32> to vector<128x128xbf16>
    %cst_17 = arith.constant dense<0.000000e+00> : vector<16x128xf32>
    %25 = tpu.matmul %23, %24, %cst_17 {dimension_numbers = #tpu.dot_dimension_numbers<[1], [0], [0], [1], [0, 0, 1, 1], [], []>} : vector<16x128xbf16>, vector<128x128xbf16>, vector<16x128xf32> -> vector<16x128xf32>
    %26 = arith.truncf %25 : vector<16x128xf32> to vector<16x128xbf16>
    %c0_18 = arith.constant 0 : index
    %c0_19 = arith.constant 0 : index
    %27 = vector.load %arg8[%c0_18, %c0_19] : memref<128x128xbf16, #tpu.memory_space<vmem>>, vector<128x128xbf16>
    %cst_20 = arith.constant dense<0.000000e+00> : vector<16x128xf32>
    %28 = tpu.matmul %26, %27, %cst_20 {dimension_numbers = #tpu.dot_dimension_numbers<[1], [0], [0], [1], [0, 0, 1, 1], [], []>} : vector<16x128xbf16>, vector<128x128xbf16>, vector<16x128xf32> -> vector<16x128xf32>
    %c0_21 = arith.constant 0 : index
    %c0_22 = arith.constant 0 : index
    %29 = vector.load %arg9[%c0_21, %c0_22] : memref<1x128xf32, #tpu.memory_space<vmem>>, vector<1x128xf32>
    %30 = vector.broadcast %29 : vector<1x128xf32> to vector<16x128xf32>
    %31 = arith.addf %28, %30 : vector<16x128xf32>
    %c0_23 = arith.constant 0 : index
    %c0_24 = arith.constant 0 : index
    %32 = vector.load %arg10[%c0_23, %c0_24] : memref<16x128xf32, #tpu.memory_space<vmem>>, vector<16x128xf32>
    tpu.vector_store %arg10[%c0_23, %c0_24], %31 {strides = array<i32>} : memref<16x128xf32, #tpu.memory_space<vmem>>, vector<16x128xf32>,
    return
  }
  func.func @transform_0(%arg0: i32) -> (i32, i32) {
    %c0_i32 = arith.constant 0 : i32
    %c0_i32_0 = arith.constant 0 : i32
    %c0_i32_1 = arith.constant 0 : i32
    return %c0_i32, %c0_i32_0 : i32, i32
  }
  func.func @transform_1(%arg0: i32) -> (i32, i32) {
    %c0_i32 = arith.constant 0 : i32
    %c0_i32_0 = arith.constant 0 : i32
    %c0_i32_1 = arith.constant 0 : i32
    return %c0_i32, %c0_i32_0 : i32, i32
  }
  func.func @transform_2(%arg0: i32) -> (i32, i32) {
    %c0_i32 = arith.constant 0 : i32
    %c0_i32_0 = arith.constant 0 : i32
    %c0_i32_1 = arith.constant 0 : i32
    return %c0_i32, %c0_i32_0 : i32, i32
  }
  func.func @transform_3(%arg0: i32) -> (i32, i32) {
    %c0_i32 = arith.constant 0 : i32
    %c0_i32_0 = arith.constant 0 : i32
    %c0_i32_1 = arith.constant 0 : i32
    return %c0_i32, %c0_i32_0 : i32, i32
  }
  func.func @transform_4(%arg0: i32) -> (i32, i32) {
    %c0_i32 = arith.constant 0 : i32
    %c0_i32_0 = arith.constant 0 : i32
    %c0_i32_1 = arith.constant 0 : i32
    return %c0_i32, %c0_i32_0 : i32, i32
  }
  func.func @transform_5(%arg0: i32) -> (i32, i32) {
    %c0_i32 = arith.constant 0 : i32
    %c0_i32_0 = arith.constant 0 : i32
    %c0_i32_1 = arith.constant 0 : i32
    return %c0_i32, %c0_i32_0 : i32, i32
  }
  func.func @transform_6(%arg0: i32) -> (i32, i32) {
    %c0_i32 = arith.constant 0 : i32
    %c0_i32_0 = arith.constant 0 : i32
    %c0_i32_1 = arith.constant 0 : i32
    return %c0_i32, %c0_i32_0 : i32, i32
  }
  func.func @transform_7(%arg0: i32) -> (i32, i32) {
    %c0_i32 = arith.constant 0 : i32
    %c0_i32_0 = arith.constant 0 : i32
    %c0_i32_1 = arith.constant 0 : i32
    return %c0_i32, %c0_i32_0 : i32, i32
  }
  func.func @transform_8(%arg0: i32) -> (i32, i32) {
    %c0_i32 = arith.constant 0 : i32
    %c0_i32_0 = arith.constant 0 : i32
    %c0_i32_1 = arith.constant 0 : i32
    return %c0_i32, %c0_i32_0 : i32, i32
  }
  func.func @transform_9(%arg0: i32) -> (i32, i32) {
    %c0_i32 = arith.constant 0 : i32
    %c0_i32_0 = arith.constant 0 : i32
    %c0_i32_1 = arith.constant 0 : i32
    return %c0_i32, %c0_i32_0 : i32, i32
  }
}

</mosaic_0001>

<llo_original>
// kernel: tpu_custom_call.1
$region0: #{tpu_custom_call.1}
  #allocation0 [shape = 'u32[]', space=smem, size = 0x4, offset = 0x4, fixed_abs, tag = 'smem constant byte address 0x4 - core index']
  #allocation1 [shape = 'u32[72,128]{1,0:T(1,128)}', space=vmem, size = 0x9000, scoped, tag = 'internal scratch']
  %s0 = inlined_call_operand.vmem [shape: bf16[128,128], index: 0, kind: input, shape index: {}]
  %s1 = inlined_call_operand.vmem [shape: f32[128,1], index: 1, kind: input, shape index: {}]
  %s2 = inlined_call_operand.vmem [shape: f32[1,128], index: 2, kind: input, shape index: {}]
  %s3 = inlined_call_operand.vmem [shape: f32[1,128], index: 3, kind: input, shape index: {}]
  %s4 = inlined_call_operand.vmem [shape: bf16[128,128], index: 4, kind: input, shape index: {}]
  %s5 = inlined_call_operand.vmem [shape: f32[1,128], index: 5, kind: input, shape index: {}]
  %s6 = inlined_call_operand.hbm [shape: bf16[16,128], index: 6, kind: input, shape index: {}]
  %s7 = inlined_call_operand.hbm [shape: bf16[128,128], index: 7, kind: input, shape index: {}]
  %s8 = inlined_call_operand.vmem [shape: f32[1,128], index: 8, kind: input, shape index: {}]
  %s9 = inlined_call_operand.hbm [shape: f32[16,128], index: 9, kind: output, shape index: {}]
  %s10 = sld [smem:[#allocation0]]
  $region54: #{tpu_custom_call.1} parent=0
    _
  %s12 = ssub.s32 1, %s10
  %s13 = scalar_select 0, %s12, %s10
  $region1: #{tpu_custom_call.1} parent=0
    #allocation2 [shape = 'u8[4096]{0}', space=vmem, size = 0x1000, scoped, tag = 'input window, operand 6, single buffered']
    #allocation3 [shape = 's32[1]{0}', space=sflag, size = 0x4, scoped, tag = 'scoped memory for tpu_custom_call.1']
    #allocation4 [shape = 's32[1]{0}', space=sflag, size = 0x4, scoped, tag = 'scoped memory for tpu_custom_call.1']
    #allocation5 [shape = 'u8[32768]{0}', space=vmem, size = 0x8000, scoped, tag = 'input window, operand 7, single buffered']
    #allocation6 [shape = 's32[1]{0}', space=sflag, size = 0x4, scoped, tag = 'scoped memory for tpu_custom_call.1']
    #allocation7 [shape = 'u8[8192]{0}', space=vmem, size = 0x2000, scoped, tag = 'output window, operand 0, single buffered']
    %14 = vsyncpa [#allocation3], 0
    %15 = vsyncpa [#allocation6], 0
    %16 = vsyncpa [#allocation4], 0
    // Predicated region
    $region2: #{tpu_custom_call.1} parent=1 // pred_check
      _
    $region3: #{tpu_custom_call.1} parent=1 // pred_check_branch
      %18 = sbr.rel (0) target = $region5
    $region4: #{tpu_custom_call.1} parent=1 // pred_region
      _
    $region5: #{tpu_custom_call.1} parent=1 // pred_fallthru
      _
    // Predicated region
    $region6: #{tpu_custom_call.1} parent=1 // pred_check
      _
    $region7: #{tpu_custom_call.1} parent=1 // pred_check_branch
      %20 = sbr.rel (0) target = $region9
    $region8: #{tpu_custom_call.1} parent=1 // pred_region
      _
    $region9: #{tpu_custom_call.1} parent=1 // pred_fallthru
      _
    // Predicated region
    $region10: #{tpu_custom_call.1} parent=1 // pred_check
      _
    $region11: #{tpu_custom_call.1} parent=1 // pred_check_branch
      %22 = sbr.rel (0) target = $region13
    $region12: #{tpu_custom_call.1} parent=1 // pred_region
      _
    $region13: #{tpu_custom_call.1} parent=1 // pred_fallthru
      _
    // Predicated region
    $region14: #{tpu_custom_call.1} parent=1 // pred_check
      _
    $region15: #{tpu_custom_call.1} parent=1 // pred_check_branch
      %24 = sbr.rel (0) target = $region17
    $region16: #{tpu_custom_call.1} parent=1 // pred_region
      _
    $region17: #{tpu_custom_call.1} parent=1 // pred_fallthru
      _
    // Predicated region
    $region18: #{tpu_custom_call.1} parent=1 // pred_check
      _
    $region19: #{tpu_custom_call.1} parent=1 // pred_check_branch
      %26 = sbr.rel (0) target = $region21
    $region20: #{tpu_custom_call.1} parent=1 // pred_region
      _
    $region21: #{tpu_custom_call.1} parent=1 // pred_fallthru
      _
    // Predicated region
    $region22: #{tpu_custom_call.1} parent=1 // pred_check
      _
    $region23: #{tpu_custom_call.1} parent=1 // pred_check_branch
      %28 = sbr.rel (0) target = $region25
    $region24: #{tpu_custom_call.1} parent=1 // pred_region
      _
    $region25: #{tpu_custom_call.1} parent=1 // pred_fallthru
      _
    // Predicated region
    $region26: #{tpu_custom_call.1} parent=1 // pred_check
      _
    $region27: #{tpu_custom_call.1} parent=1 // pred_check_branch
      %30 = sbr.rel (0) target = $region29
    $region28: #{tpu_custom_call.1} parent=1 // pred_region
      %32 = vsyncadd [#allocation3], 0
      %s33 = sshll.u32 %s6, 4
      %s34 = int_to_ptr.hbm [resolvable:$true] %s33
      %s35 = sshll.u32 [#allocation2], 4
      %s36 = int_to_ptr.vmem [resolvable:$true] %s35
      %41 = dma.hbm_to_vmem [thread:$0]  %s34, 128, %s36, [#allocation3], 64, 64, 4
    $region29: #{tpu_custom_call.1} parent=1 // pred_fallthru
      _
    // Predicated region
    $region30: #{tpu_custom_call.1} parent=1 // pred_check
      _
    $region31: #{tpu_custom_call.1} parent=1 // pred_check_branch
      %43 = sbr.rel (0) target = $region33
    $region32: #{tpu_custom_call.1} parent=1 // pred_region
      %45 = vsyncadd [#allocation6], 0
      %s46 = sshll.u32 %s7, 4
      %s47 = int_to_ptr.hbm [resolvable:$true] %s46
      %s48 = sshll.u32 [#allocation5], 4
      %s49 = int_to_ptr.vmem [resolvable:$true] %s48
      %54 = dma.hbm_to_vmem [thread:$0]  %s47, 1024, %s49, [#allocation6], 64, 64, 4
    $region33: #{tpu_custom_call.1} parent=1 // pred_fallthru
      _
    // Predicated region
    $region34: #{tpu_custom_call.1} parent=1 // pred_check
      _
    $region35: #{tpu_custom_call.1} parent=1 // pred_check_branch
      %56 = sbr.rel (0) target = $region37
    $region36: #{tpu_custom_call.1} parent=1 // pred_region
      _
    $region37: #{tpu_custom_call.1} parent=1 // pred_fallthru
      _
    // Predicated region
    $region38: #{tpu_custom_call.1} parent=1 // pred_check
      _
    $region39: #{tpu_custom_call.1} parent=1 // pred_check_branch
      %58 = sbr.rel (0) target = $region41
    $region40: #{tpu_custom_call.1} parent=1 // pred_region
      %60 = dma.done [#allocation3], 128
    $region41: #{tpu_custom_call.1} parent=1 // pred_fallthru
      _
    // Predicated region
    $region42: #{tpu_custom_call.1} parent=1 // pred_check
      _
    $region43: #{tpu_custom_call.1} parent=1 // pred_check_branch
      %62 = sbr.rel (0) target = $region45
    $region44: #{tpu_custom_call.1} parent=1 // pred_region
      %64 = dma.done [#allocation6], 1024
    $region45: #{tpu_custom_call.1} parent=1 // pred_fallthru
      _
    %v65 = vld [vmem:[%s0] sm:$0xf]
    %v66 = vld [vmem:[%s0 + $0x4] sm:$0xf]
    %v67 = vld [vmem:[%s0 + $0x8] sm:$0xf]
    %v68 = vld [vmem:[%s0 + $0xc] sm:$0xf]
    %v69 = vld [vmem:[%s0 + $0x10] sm:$0xf]
    %v70 = vld [vmem:[%s0 + $0x14] sm:$0xf]
    %v71 = vld [vmem:[%s0 + $0x18] sm:$0xf]
    %v72 = vld [vmem:[%s0 + $0x1c] sm:$0xf]
    %v73 = vld [vmem:[%s0 + $0x20] sm:$0xf]
    %v74 = vld [vmem:[%s0 + $0x24] sm:$0xf]
    %v75 = vld [vmem:[%s0 + $0x28] sm:$0xf]
    %v76 = vld [vmem:[%s0 + $0x2c] sm:$0xf]
    %v77 = vld [vmem:[%s0 + $0x30] sm:$0xf]
    %v78 = vld [vmem:[%s0 + $0x34] sm:$0xf]
    %v79 = vld [vmem:[%s0 + $0x38] sm:$0xf]
    %v80 = vld [vmem:[%s0 + $0x3c] sm:$0xf]
    %v81 = vld [vmem:[%s1] sm:$0xff]
    %v82 = vld [vmem:[%s1 + $0x8] sm:$0xff]
    %v83 = vld [vmem:[%s1 + $0x10] sm:$0xff]
    %v84 = vld [vmem:[%s1 + $0x18] sm:$0xff]
    %v85 = vld [vmem:[%s1 + $0x20] sm:$0xff]
    %v86 = vld [vmem:[%s1 + $0x28] sm:$0xff]
    %v87 = vld [vmem:[%s1 + $0x30] sm:$0xff]
    %v88 = vld [vmem:[%s1 + $0x38] sm:$0xff]
    %v89 = vld [vmem:[%s1 + $0x40] sm:$0xff]
    %v90 = vld [vmem:[%s1 + $0x48] sm:$0xff]
    %v91 = vld [vmem:[%s1 + $0x50] sm:$0xff]
    %v92 = vld [vmem:[%s1 + $0x58] sm:$0xff]
    %v93 = vld [vmem:[%s1 + $0x60] sm:$0xff]
    %v94 = vld [vmem:[%s1 + $0x68] sm:$0xff]
    %v95 = vld [vmem:[%s1 + $0x70] sm:$0xff]
    %v96 = vld [vmem:[%s1 + $0x78] sm:$0xff]
    %v97 = vld [vmem:[%s2] sm:$0x1]
    %99 = vset.pattern.permute.xlu0 0
    %100 = vperm.xlu0 %99, %v81
    %v101 = vpop.permute.xlu0 %100
    %104 = vset.pattern.permute.xlu0 0
    %105 = vperm.xlu0 %104, %v82
    %v106 = vpop.permute.xlu0 %105
    %109 = vset.pattern.permute.xlu0 0
    %110 = vperm.xlu0 %109, %v83
    %v111 = vpop.permute.xlu0 %110
    %114 = vset.pattern.permute.xlu0 0
    %115 = vperm.xlu0 %114, %v84
    %v116 = vpop.permute.xlu0 %115
    %119 = vset.pattern.permute.xlu0 0
    %120 = vperm.xlu0 %119, %v85
    %v121 = vpop.permute.xlu0 %120
    %124 = vset.pattern.permute.xlu0 0
    %125 = vperm.xlu0 %124, %v86
    %v126 = vpop.permute.xlu0 %125
    %129 = vset.pattern.permute.xlu0 0
    %130 = vperm.xlu0 %129, %v87
    %v131 = vpop.permute.xlu0 %130
    %134 = vset.pattern.permute.xlu0 0
    %135 = vperm.xlu0 %134, %v88
    %v136 = vpop.permute.xlu0 %135
    %139 = vset.pattern.permute.xlu0 0
    %140 = vperm.xlu0 %139, %v89
    %v141 = vpop.permute.xlu0 %140
    %144 = vset.pattern.permute.xlu0 0
    %145 = vperm.xlu0 %144, %v90
    %v146 = vpop.permute.xlu0 %145
    %149 = vset.pattern.permute.xlu0 0
    %150 = vperm.xlu0 %149, %v91
    %v151 = vpop.permute.xlu0 %150
    %154 = vset.pattern.permute.xlu0 0
    %155 = vperm.xlu0 %154, %v92
    %v156 = vpop.permute.xlu0 %155
    %159 = vset.pattern.permute.xlu0 0
    %160 = vperm.xlu0 %159, %v93
    %v161 = vpop.permute.xlu0 %160
    %164 = vset.pattern.permute.xlu0 0
    %165 = vperm.xlu0 %164, %v94
    %v166 = vpop.permute.xlu0 %165
    %169 = vset.pattern.permute.xlu0 0
    %170 = vperm.xlu0 %169, %v95
    %v171 = vpop.permute.xlu0 %170
    %174 = vset.pattern.permute.xlu0 0
    %175 = vperm.xlu0 %174, %v96
    %v176 = vpop.permute.xlu0 %175
    %v179 = vperm.slane %v97, 0
    %v181 = vmul.f32 %v101, %v179
    %v182 = vmul.f32 %v106, %v179
    %v183 = vmul.f32 %v111, %v179
    %v184 = vmul.f32 %v116, %v179
    %v185 = vmul.f32 %v121, %v179
    %v186 = vmul.f32 %v126, %v179
    %v187 = vmul.f32 %v131, %v179
    %v188 = vmul.f32 %v136, %v179
    %v189 = vmul.f32 %v141, %v179
    %v190 = vmul.f32 %v146, %v179
    %v191 = vmul.f32 %v151, %v179
    %v192 = vmul.f32 %v156, %v179
    %v193 = vmul.f32 %v161, %v179
    %v194 = vmul.f32 %v166, %v179
    %v195 = vmul.f32 %v171, %v179
    %v196 = vmul.f32 %v176, %v179
    %v197 = vpack.c.bf16 %v182, %v181
    %v198 = vpack.c.bf16 %v184, %v183
    %v199 = vpack.c.bf16 %v186, %v185
    %v200 = vpack.c.bf16 %v188, %v187
    %v201 = vpack.c.bf16 %v190, %v189
    %v202 = vpack.c.bf16 %v192, %v191
    %v203 = vpack.c.bf16 %v194, %v193
    %v204 = vpack.c.bf16 %v196, %v195
    %v205 = vld [vmem:[%s3] sm:$0x1]
    %v207 = vperm.slane %v205, 0
    %v225 = vunpack.c.l.b16 %v65
    %v226 = vunpack.c.l.b16 %v66
    %v227 = vunpack.c.l.b16 %v67
    %v228 = vunpack.c.l.b16 %v68
    %v229 = vunpack.c.l.b16 %v69
    %v230 = vunpack.c.l.b16 %v70
    %v231 = vunpack.c.l.b16 %v71
    %v232 = vunpack.c.l.b16 %v72
    %v233 = vunpack.c.l.b16 %v73
    %v234 = vunpack.c.l.b16 %v74
    %v235 = vunpack.c.l.b16 %v75
    %v236 = vunpack.c.l.b16 %v76
    %v237 = vunpack.c.l.b16 %v77
    %v238 = vunpack.c.l.b16 %v78
    %v239 = vunpack.c.l.b16 %v79
    %v240 = vunpack.c.l.b16 %v80
    %v241 = vpack.c.b16 %v226, %v225
    %v242 = vpack.c.b16 %v228, %v227
    %v243 = vpack.c.b16 %v230, %v229
    %v244 = vpack.c.b16 %v232, %v231
    %v245 = vpack.c.b16 %v234, %v233
    %v246 = vpack.c.b16 %v236, %v235
    %v247 = vpack.c.b16 %v238, %v237
    %v248 = vpack.c.b16 %v240, %v239
    %257 = vmatpush.bf16.msra.mxu0 %v204
    %258 = vmatpush.bf16.msra.mxu0 %v203
    %259 = vmatpush.bf16.msra.mxu0 %v202
    %260 = vmatpush.bf16.msra.mxu0 %v201
    %261 = vmatpush.bf16.msra.mxu0 %v200
    %262 = vmatpush.bf16.msra.mxu0 %v199
    %263 = vmatpush.bf16.msra.mxu0 %v198
    %264 = vmatpush.bf16.msra.mxu0 %v197
    %265 = vmatmul.bf16.gmra.mxu0 %v241
    %v266 = vpop.f32.mrf.mxu0
    %v267 = vadd.f32 %v207, %v266
    %v268 = vpop.f32.mrf.mxu0
    %v269 = vadd.f32 %v207, %v268
    %270 = vmatmul.bf16.gmra.mxu0 %v242
    %v271 = vpop.f32.mrf.mxu0
    %v272 = vadd.f32 %v207, %v271
    %v273 = vpop.f32.mrf.mxu0
    %v274 = vadd.f32 %v207, %v273
    %275 = vmatmul.bf16.gmra.mxu0 %v243
    %v276 = vpop.f32.mrf.mxu0
    %v277 = vadd.f32 %v207, %v276
    %v278 = vpop.f32.mrf.mxu0
    %v279 = vadd.f32 %v207, %v278
    %280 = vmatmul.bf16.gmra.mxu0 %v244
    %v281 = vpop.f32.mrf.mxu0
    %v282 = vadd.f32 %v207, %v281
    %v283 = vpop.f32.mrf.mxu0
    %v284 = vadd.f32 %v207, %v283
    %285 = vmatmul.bf16.gmra.mxu0 %v245
    %v286 = vpop.f32.mrf.mxu0
    %v287 = vadd.f32 %v207, %v286
    %v288 = vpop.f32.mrf.mxu0
    %v289 = vadd.f32 %v207, %v288
    %290 = vmatmul.bf16.gmra.mxu0 %v246
    %v291 = vpop.f32.mrf.mxu0
    %v292 = vadd.f32 %v207, %v291
    %v293 = vpop.f32.mrf.mxu0
    %v294 = vadd.f32 %v207, %v293
    %295 = vmatmul.bf16.gmra.mxu0 %v247
    %v296 = vpop.f32.mrf.mxu0
    %v297 = vadd.f32 %v207, %v296
    %v298 = vpop.f32.mrf.mxu0
    %v299 = vadd.f32 %v207, %v298
    %300 = vmatmul.bf16.gmra.mxu0 %v248
    %v301 = vpop.f32.mrf.mxu0
    %v302 = vadd.f32 %v207, %v301
    %v303 = vpop.f32.mrf.mxu0
    %v304 = vadd.f32 %v207, %v303
    %305 = vdwg.mxu0
    %v306 = vmax.f32 %v267, 0.0
    %v307 = vmax.f32 %v269, 0.0
    %v308 = vmax.f32 %v272, 0.0
    %v309 = vmax.f32 %v274, 0.0
    %v310 = vmax.f32 %v277, 0.0
    %v311 = vmax.f32 %v279, 0.0
    %v312 = vmax.f32 %v282, 0.0
    %v313 = vmax.f32 %v284, 0.0
    %v314 = vmax.f32 %v287, 0.0
    %v315 = vmax.f32 %v289, 0.0
    %v316 = vmax.f32 %v292, 0.0
    %v317 = vmax.f32 %v294, 0.0
    %v318 = vmax.f32 %v297, 0.0
    %v319 = vmax.f32 %v299, 0.0
    %v320 = vmax.f32 %v302, 0.0
    %v321 = vmax.f32 %v304, 0.0
    %v322 = vpack.c.bf16 %v307, %v306
    %v323 = vpack.c.bf16 %v309, %v308
    %v324 = vpack.c.bf16 %v311, %v310
    %v325 = vpack.c.bf16 %v313, %v312
    %v326 = vpack.c.bf16 %v315, %v314
    %v327 = vpack.c.bf16 %v317, %v316
    %v328 = vpack.c.bf16 %v319, %v318
    %v329 = vpack.c.bf16 %v321, %v320
    %v330 = vld [vmem:[%s4] sm:$0xf]
    %v331 = vld [vmem:[%s4 + $0x4] sm:$0xf]
    %v332 = vld [vmem:[%s4 + $0x8] sm:$0xf]
    %v333 = vld [vmem:[%s4 + $0xc] sm:$0xf]
    %v334 = vld [vmem:[%s4 + $0x10] sm:$0xf]
    %v335 = vld [vmem:[%s4 + $0x14] sm:$0xf]
    %v336 = vld [vmem:[%s4 + $0x18] sm:$0xf]
    %v337 = vld [vmem:[%s4 + $0x1c] sm:$0xf]
    %v338 = vld [vmem:[%s4 + $0x20] sm:$0xf]
    %v339 = vld [vmem:[%s4 + $0x24] sm:$0xf]
    %v340 = vld [vmem:[%s4 + $0x28] sm:$0xf]
    %v341 = vld [vmem:[%s4 + $0x2c] sm:$0xf]
    %v342 = vld [vmem:[%s4 + $0x30] sm:$0xf]
    %v343 = vld [vmem:[%s4 + $0x34] sm:$0xf]
    %v344 = vld [vmem:[%s4 + $0x38] sm:$0xf]
    %v345 = vld [vmem:[%s4 + $0x3c] sm:$0xf]
    %v362 = vunpack.c.l.b16 %v330
    %v363 = vunpack.c.l.b16 %v331
    %v364 = vunpack.c.l.b16 %v332
    %v365 = vunpack.c.l.b16 %v333
    %v366 = vunpack.c.l.b16 %v334
    %v367 = vunpack.c.l.b16 %v335
    %v368 = vunpack.c.l.b16 %v336
    %v369 = vunpack.c.l.b16 %v337
    %v370 = vunpack.c.l.b16 %v338
    %v371 = vunpack.c.l.b16 %v339
    %v372 = vunpack.c.l.b16 %v340
    %v373 = vunpack.c.l.b16 %v341
    %v374 = vunpack.c.l.b16 %v342
    %v375 = vunpack.c.l.b16 %v343
    %v376 = vunpack.c.l.b16 %v344
    %v377 = vunpack.c.l.b16 %v345
    %v378 = vpack.c.b16 %v363, %v362
    %v379 = vpack.c.b16 %v365, %v364
    %v380 = vpack.c.b16 %v367, %v366
    %v381 = vpack.c.b16 %v369, %v368
    %v382 = vpack.c.b16 %v371, %v370
    %v383 = vpack.c.b16 %v373, %v372
    %v384 = vpack.c.b16 %v375, %v374
    %v385 = vpack.c.b16 %v377, %v376
    %394 = vmatpush.bf16.msra.mxu0 %v385
    %395 = vmatpush.bf16.msra.mxu0 %v384
    %396 = vmatpush.bf16.msra.mxu0 %v383
    %397 = vmatpush.bf16.msra.mxu0 %v382
    %398 = vmatpush.bf16.msra.mxu0 %v381
    %399 = vmatpush.bf16.msra.mxu0 %v380
    %400 = vmatpush.bf16.msra.mxu0 %v379
    %401 = vmatpush.bf16.msra.mxu0 %v378
    %402 = vmatmul.bf16.gmra.mxu0 %v322
    %v403 = vpop.f32.mrf.mxu0
    %v404 = vadd.f32 0.0, %v403
    %v405 = vpop.f32.mrf.mxu0
    %v406 = vadd.f32 0.0, %v405
    %407 = vmatmul.bf16.gmra.mxu0 %v323
    %v408 = vpop.f32.mrf.mxu0
    %v409 = vadd.f32 0.0, %v408
    %v410 = vpop.f32.mrf.mxu0
    %v411 = vadd.f32 0.0, %v410
    %412 = vmatmul.bf16.gmra.mxu0 %v324
    %v413 = vpop.f32.mrf.mxu0
    %v414 = vadd.f32 0.0, %v413
    %v415 = vpop.f32.mrf.mxu0
    %v416 = vadd.f32 0.0, %v415
    %417 = vmatmul.bf16.gmra.mxu0 %v325
    %v418 = vpop.f32.mrf.mxu0
    %v419 = vadd.f32 0.0, %v418
    %v420 = vpop.f32.mrf.mxu0
    %v421 = vadd.f32 0.0, %v420
    %422 = vmatmul.bf16.gmra.mxu0 %v326
    %v423 = vpop.f32.mrf.mxu0
    %v424 = vadd.f32 0.0, %v423
    %v425 = vpop.f32.mrf.mxu0
    %v426 = vadd.f32 0.0, %v425
    %427 = vmatmul.bf16.gmra.mxu0 %v327
    %v428 = vpop.f32.mrf.mxu0
    %v429 = vadd.f32 0.0, %v428
    %v430 = vpop.f32.mrf.mxu0
    %v431 = vadd.f32 0.0, %v430
    %432 = vmatmul.bf16.gmra.mxu0 %v328
    %v433 = vpop.f32.mrf.mxu0
    %v434 = vadd.f32 0.0, %v433
    %v435 = vpop.f32.mrf.mxu0
    %v436 = vadd.f32 0.0, %v435
    %437 = vmatmul.bf16.gmra.mxu0 %v329
    %v438 = vpop.f32.mrf.mxu0
    %v439 = vadd.f32 0.0, %v438
    %v440 = vpop.f32.mrf.mxu0
    %v441 = vadd.f32 0.0, %v440
    %442 = vdwg.mxu0
    %v443 = vpack.c.bf16 %v406, %v404
    %v444 = vpack.c.bf16 %v411, %v409
    %v445 = vpack.c.bf16 %v416, %v414
    %v446 = vpack.c.bf16 %v421, %v419
    %v447 = vpack.c.bf16 %v426, %v424
    %v448 = vpack.c.bf16 %v431, %v429
    %v449 = vpack.c.bf16 %v436, %v434
    %v450 = vpack.c.bf16 %v441, %v439
    %v451 = vld [vmem:[%s5] sm:$0x1]
    %v453 = vperm.slane %v451, 0
    %455 = vmatpush.bf16.msra.mxu0 %v450
    %456 = vmatpush.bf16.msra.mxu0 %v449
    %457 = vmatpush.bf16.msra.mxu0 %v448
    %458 = vmatpush.bf16.msra.mxu0 %v447
    %459 = vmatpush.bf16.msra.mxu0 %v446
    %460 = vmatpush.bf16.msra.mxu0 %v445
    %461 = vmatpush.bf16.msra.mxu0 %v444
    %462 = vmatpush.bf16.msra.mxu0 %v443
    %463 = vmatmul.bf16.gmra.mxu0 %v241
    %v464 = vpop.f32.mrf.mxu0
    %v465 = vadd.f32 %v453, %v464
    %v466 = vpop.f32.mrf.mxu0
    %v467 = vadd.f32 %v453, %v466
    %468 = vmatmul.bf16.gmra.mxu0 %v242
    %v469 = vpop.f32.mrf.mxu0
    %v470 = vadd.f32 %v453, %v469
    %v471 = vpop.f32.mrf.mxu0
    %v472 = vadd.f32 %v453, %v471
    %473 = vmatmul.bf16.gmra.mxu0 %v243
    %v474 = vpop.f32.mrf.mxu0
    %v475 = vadd.f32 %v453, %v474
    %v476 = vpop.f32.mrf.mxu0
    %v477 = vadd.f32 %v453, %v476
    %478 = vmatmul.bf16.gmra.mxu0 %v244
    %v479 = vpop.f32.mrf.mxu0
    %v480 = vadd.f32 %v453, %v479
    %v481 = vpop.f32.mrf.mxu0
    %v482 = vadd.f32 %v453, %v481
    %483 = vmatmul.bf16.gmra.mxu0 %v245
    %v484 = vpop.f32.mrf.mxu0
    %v485 = vadd.f32 %v453, %v484
    %v486 = vpop.f32.mrf.mxu0
    %v487 = vadd.f32 %v453, %v486
    %488 = vmatmul.bf16.gmra.mxu0 %v246
    %v489 = vpop.f32.mrf.mxu0
    %v490 = vadd.f32 %v453, %v489
    %v491 = vpop.f32.mrf.mxu0
    %v492 = vadd.f32 %v453, %v491
    %493 = vmatmul.bf16.gmra.mxu0 %v247
    %v494 = vpop.f32.mrf.mxu0
    %v495 = vadd.f32 %v453, %v494
    %v496 = vpop.f32.mrf.mxu0
    %v497 = vadd.f32 %v453, %v496
    %498 = vmatmul.bf16.gmra.mxu0 %v248
    %v499 = vpop.f32.mrf.mxu0
    %v500 = vadd.f32 %v453, %v499
    %v501 = vpop.f32.mrf.mxu0
    %v502 = vadd.f32 %v453, %v501
    %503 = vdwg.mxu0
    %v504 = vmax.f32 %v465, 0.0
    %v505 = vmax.f32 %v467, 0.0
    %v506 = vmax.f32 %v470, 0.0
    %v507 = vmax.f32 %v472, 0.0
    %v508 = vmax.f32 %v475, 0.0
    %v509 = vmax.f32 %v477, 0.0
    %v510 = vmax.f32 %v480, 0.0
    %v511 = vmax.f32 %v482, 0.0
    %v512 = vmax.f32 %v485, 0.0
    %v513 = vmax.f32 %v487, 0.0
    %v514 = vmax.f32 %v490, 0.0
    %v515 = vmax.f32 %v492, 0.0
    %v516 = vmax.f32 %v495, 0.0
    %v517 = vmax.f32 %v497, 0.0
    %v518 = vmax.f32 %v500, 0.0
    %v519 = vmax.f32 %v502, 0.0
    %v520 = vld [vmem:[#allocation2] sm:$0xf]
    %v521 = vld [vmem:[#allocation2 + $0x4] sm:$0xf]
    %v522 = vpack.c.bf16 %v505, %v504
    %v523 = vpack.c.bf16 %v507, %v506
    %v524 = vpack.c.bf16 %v509, %v508
    %v525 = vpack.c.bf16 %v511, %v510
    %v526 = vpack.c.bf16 %v513, %v512
    %v527 = vpack.c.bf16 %v515, %v514
    %v528 = vpack.c.bf16 %v517, %v516
    %v529 = vpack.c.bf16 %v519, %v518
    %v532 = vunpack.c.l.b16 %v520
    %v533 = vunpack.c.l.b16 %v521
    %v534 = vpack.c.b16 %v533, %v532
    %536 = vmatpush.bf16.msra.mxu0 %v529
    %537 = vmatpush.bf16.msra.mxu0 %v528
    %538 = vmatpush.bf16.msra.mxu0 %v527
    %539 = vmatpush.bf16.msra.mxu0 %v526
    %540 = vmatpush.bf16.msra.mxu0 %v525
    %541 = vmatpush.bf16.msra.mxu0 %v524
    %542 = vmatpush.bf16.msra.mxu0 %v523
    %543 = vmatpush.bf16.msra.mxu0 %v522
    %544 = vmatmul.bf16.gmra.mxu0 %v534
    %v545 = vpop.f32.mrf.mxu0
    %v546 = vadd.f32 0.0, %v545
    %v547 = vpop.f32.mrf.mxu0
    %v548 = vadd.f32 0.0, %v547
    %549 = vdwg.mxu0
    %v550 = vpack.c.bf16 %v548, %v546
    %v551 = vld [vmem:[#allocation5] sm:$0xf]
    %v552 = vld [vmem:[#allocation5 + $0x4] sm:$0xf]
    %v553 = vld [vmem:[#allocation5 + $0x8] sm:$0xf]
    %v554 = vld [vmem:[#allocation5 + $0xc] sm:$0xf]
    %v555 = vld [vmem:[#allocation5 + $0x10] sm:$0xf]
    %v556 = vld [vmem:[#allocation5 + $0x14] sm:$0xf]
    %v557 = vld [vmem:[#allocation5 + $0x18] sm:$0xf]
    %v558 = vld [vmem:[#allocation5 + $0x1c] sm:$0xf]
    %v559 = vld [vmem:[#allocation5 + $0x20] sm:$0xf]
    %v560 = vld [vmem:[#allocation5 + $0x24] sm:$0xf]
    %v561 = vld [vmem:[#allocation5 + $0x28] sm:$0xf]
    %v562 = vld [vmem:[#allocation5 + $0x2c] sm:$0xf]
    %v563 = vld [vmem:[#allocation5 + $0x30] sm:$0xf]
    %v564 = vld [vmem:[#allocation5 + $0x34] sm:$0xf]
    %v565 = vld [vmem:[#allocation5 + $0x38] sm:$0xf]
    %v566 = vld [vmem:[#allocation5 + $0x3c] sm:$0xf]
    %v567 = vld [vmem:[%s8] sm:$0x1]
    %v569 = vperm.slane %v567, 0
    %v587 = vunpack.c.l.b16 %v551
    %v588 = vunpack.c.l.b16 %v552
    %v589 = vunpack.c.l.b16 %v553
    %v590 = vunpack.c.l.b16 %v554
    %v591 = vunpack.c.l.b16 %v555
    %v592 = vunpack.c.l.b16 %v556
    %v593 = vunpack.c.l.b16 %v557
    %v594 = vunpack.c.l.b16 %v558
    %v595 = vunpack.c.l.b16 %v559
    %v596 = vunpack.c.l.b16 %v560
    %v597 = vunpack.c.l.b16 %v561
    %v598 = vunpack.c.l.b16 %v562
    %v599 = vunpack.c.l.b16 %v563
    %v600 = vunpack.c.l.b16 %v564
    %v601 = vunpack.c.l.b16 %v565
    %v602 = vunpack.c.l.b16 %v566
    %v603 = vpack.c.b16 %v588, %v587
    %v604 = vpack.c.b16 %v590, %v589
    %v605 = vpack.c.b16 %v592, %v591
    %v606 = vpack.c.b16 %v594, %v593
    %v607 = vpack.c.b16 %v596, %v595
    %v608 = vpack.c.b16 %v598, %v597
    %v609 = vpack.c.b16 %v600, %v599
    %v610 = vpack.c.b16 %v602, %v601
    %619 = vmatpush.bf16.msra.mxu0 %v610
    %620 = vmatpush.bf16.msra.mxu0 %v609
    %621 = vmatpush.bf16.msra.mxu0 %v608
    %622 = vmatpush.bf16.msra.mxu0 %v607
    %623 = vmatpush.bf16.msra.mxu0 %v606
    %624 = vmatpush.bf16.msra.mxu0 %v605
    %625 = vmatpush.bf16.msra.mxu0 %v604
    %626 = vmatpush.bf16.msra.mxu0 %v603
    %627 = vmatmul.bf16.gmra.mxu0 %v550
    %v628 = vpop.f32.mrf.mxu0
    %v629 = vadd.f32 %v569, %v628
    %v630 = vpop.f32.mrf.mxu0
    %v631 = vadd.f32 %v569, %v630
    %632 = vdwg.mxu0
    %633 = vst [vmem:[#allocation7] sm:$0xff] %v629
    %634 = vst [vmem:[#allocation7 + $0x8] sm:$0xff] %v631
    // Predicated region
    $region46: #{tpu_custom_call.1} parent=1 // pred_check
      _
    $region47: #{tpu_custom_call.1} parent=1 // pred_check_branch
      %636 = sbr.rel (0) target = $region49
    $region48: #{tpu_custom_call.1} parent=1 // pred_region
      %638 = vsyncadd [#allocation4], 0
      %s639 = sshll.u32 [#allocation7], 4
      %s640 = int_to_ptr.vmem [resolvable:$true] %s639
      %s641 = sshll.u32 %s9, 4
      %s642 = int_to_ptr.hbm [resolvable:$true] %s641
      %647 = dma.vmem_to_hbm [thread:$0]  %s640, 256, %s642, [#allocation4], 128, 128, 8
    $region49: #{tpu_custom_call.1} parent=1 // pred_fallthru
      _
    // Predicated region
    $region50: #{tpu_custom_call.1} parent=1 // pred_check
      _
    $region51: #{tpu_custom_call.1} parent=1 // pred_check_branch
      %649 = sbr.rel (0) target = $region53
    $region52: #{tpu_custom_call.1} parent=1 // pred_region
      %651 = dma.done [#allocation4], 256
    $region53: #{tpu_custom_call.1} parent=1 // pred_fallthru
      _
    %652 = vsyncpa [#allocation3], 1
    %653 = vsyncpa [#allocation6], 1
    %654 = vsyncpa [#allocation4], 1

</llo_original>
